<compile_context>
chip_gen: v7x
topology: tpu7x:2x2x1
jax: 0.10.0
libtpu: 0.0.40
codegen_flags: <defaults>
</compile_context>

<pallas_src>
import functools

import numpy as np
import jax
import jax.numpy as jnp
from jax import lax
from jax.experimental import pallas as pl
from jax.experimental.pallas import tpu as pltpu


_NEG_BIG = -1e30  # effectively -inf for masked (padded) sequence positions


# ---------------- shared epilogue ----------------

def _masked_softmax(en, S, S_pad):
    """Row softmax over the lane axis with padded columns masked out."""
    if S != S_pad:                                           # static branch
        col = lax.broadcasted_iota(jnp.int32, en.shape, 1)
        en = jnp.where(col < S, en, _NEG_BIG)
    m = jnp.max(en, axis=-1, keepdims=True)
    p = jnp.exp(en - m)
    return p / jnp.sum(p, axis=-1, keepdims=True)


def _write_tile_and_finalize(o_ref, tile, s_idx, S, S_pad, TS):
    """Store this S-tile's energies; on the last S step do masked softmax in place."""
    if S_pad == TS:
        # Single-tile sequence: softmax the register tile directly, one store.
        o_ref[...] = _masked_softmax(tile, S, S_pad)
        return

    start = pl.multiple_of(s_idx * TS, TS)
    o_ref[:, pl.ds(start, TS)] = tile                        # (1, TS) lane-dense store

    @pl.when(s_idx == pl.num_programs(1) - 1)
    def _():
        o_ref[...] = _masked_softmax(o_ref[...], S, S_pad)   # (1, S_pad)


# ---------------- kernels ----------------

def dot_kernel(h_ref, e_ref, o_ref, *, S, S_pad, TS):
    # h_ref: (1, H)   e_ref: (H, TS)   o_ref: (1, S_pad) resident over S tiles
    s_idx = pl.program_id(1)
    tile = jnp.dot(h_ref[...], e_ref[...], preferred_element_type=jnp.float32)
    _write_tile_and_finalize(o_ref, tile, s_idx, S, S_pad, TS)


def general_kernel(h_ref, e_ref, w_ref, o_ref, hw_scr, *, S, S_pad, TS):
    # h_ref: (1, H)   e_ref: (H, TS)   w_ref: (H, H) (nn.Linear weight, as-is)
    s_idx = pl.program_id(1)

    @pl.when(s_idx == 0)
    def _():
        # sum_i h_i (W e + b)_i == (h @ W) . e + h.b ; the h.b constant cancels
        # under softmax, so the bias is dropped and h @ W is computed once per b.
        hw_scr[...] = jnp.dot(h_ref[...], w_ref[...],
                              preferred_element_type=jnp.float32)   # (1, H)

    tile = jnp.dot(hw_scr[...], e_ref[...], preferred_element_type=jnp.float32)
    _write_tile_and_finalize(o_ref, tile, s_idx, S, S_pad, TS)


def concat_kernel(hcol_ref, e_ref, w1_ref, w2_ref, b_ref, v_ref, o_ref, he_scr,
                  *, S, S_pad, TS):
    # hcol_ref: (H, 1)  e_ref: (H, TS)  w1/w2: (H, H)  b_ref: (H, 1)  v_ref: (1, H)
    s_idx = pl.program_id(1)

    @pl.when(s_idx == 0)
    def _():
        he_scr[...] = (jnp.dot(w1_ref[...], hcol_ref[...],
                               preferred_element_type=jnp.float32)
                       + b_ref[...])                                  # (H, 1)

    ee = jnp.dot(w2_ref[...], e_ref[...],
                 preferred_element_type=jnp.float32)                  # (H, TS)
    energy = jnp.tanh(he_scr[...] + ee)                               # (H, TS)
    tile = jnp.dot(v_ref[...], energy,
                   preferred_element_type=jnp.float32)                # (1, TS)
    _write_tile_and_finalize(o_ref, tile, s_idx, S, S_pad, TS)


# ---------------- wrapper ----------------

def _pick_seq_tile(S, H, seq_tile):
    """128-multiple sequence tile, no larger than padded S, VMEM-aware default."""
    S128 = pl.cdiv(S, 128) * 128
    if seq_tile is None:
        # ~4 MiB per double-buffered f32 encoder tile (2 * H * ts * 4 bytes),
        # capped at 8192 lanes; bigger tiles amortize the ~0.35 us/step overhead.
        budget = (4 << 20) // (H * 4 * 2)
        seq_tile = max(128, min(8192, (budget // 128) * 128))
    ts = max(128, (min(seq_tile, S128) // 128) * 128)
    S_pad = pl.cdiv(S, ts) * ts
    return ts, S_pad


def run_attn(method, hidden, encoder_outputs, params=None, *, seq_tile=None):
    """hidden: (1, B, H), encoder_outputs: (S, B, H) -> (B, 1, S) attention weights."""
    S, B, H = encoder_outputs.shape
    ts, S_pad = _pick_seq_tile(S, H, seq_tile)
    n_s = S_pad // ts

    # Layout plumbing (wrapper side): S on lanes, H contracted by the MXU.
    e_bhs = jnp.transpose(encoder_outputs, (1, 2, 0)).astype(jnp.float32)  # (B, H, S)
    if S_pad != S:
        e_bhs = jnp.pad(e_bhs, ((0, 0), (0, 0), (0, S_pad - S)))

    h2d = hidden.reshape(B, H).astype(jnp.float32)

    e_spec = pl.BlockSpec((None, H, ts), lambda b, s: (b, 0, s))
    o_spec = pl.BlockSpec((None, 1, S_pad), lambda b, s: (b, 0, 0))  # resident over S
    full2d = lambda shape: pl.BlockSpec(shape, lambda b, s: (0, 0))
    hrow_spec = pl.BlockSpec((None, 1, H), lambda b, s: (b, 0, 0))

    if method == 'dot':
        kernel = functools.partial(dot_kernel, S=S, S_pad=S_pad, TS=ts)
        inputs = (h2d.reshape(B, 1, H), e_bhs)
        in_specs = [hrow_spec, e_spec]
        scratch = []
    elif method == 'general':
        kernel = functools.partial(general_kernel, S=S, S_pad=S_pad, TS=ts)
        inputs = (h2d.reshape(B, 1, H), e_bhs, params['W'].astype(jnp.float32))
        in_specs = [hrow_spec, e_spec, full2d((H, H))]
        scratch = [pltpu.VMEM((1, H), jnp.float32)]
    elif method == 'concat':
        kernel = functools.partial(concat_kernel, S=S, S_pad=S_pad, TS=ts)
        W = params['W'].astype(jnp.float32)                  # (H, 2H), nn.Linear layout
        inputs = (h2d.reshape(B, H, 1), e_bhs,
                  W[:, :H], W[:, H:],
                  params['b'].astype(jnp.float32).reshape(H, 1),
                  params['v'].astype(jnp.float32).reshape(1, H))
        in_specs = [pl.BlockSpec((None, H, 1), lambda b, s: (b, 0, 0)), e_spec,
                    full2d((H, H)), full2d((H, H)), full2d((H, 1)), full2d((1, H))]
        scratch = [pltpu.VMEM((H, 1), jnp.float32)]
    else:
        raise ValueError(method, 'is not an appropriate attention method.')

    out = pl.pallas_call(
        kernel,
        out_shape=jax.ShapeDtypeStruct((B, 1, S_pad), jnp.float32),
        grid=(B, n_s),
        in_specs=in_specs,
        out_specs=o_spec,
        scratch_shapes=scratch,
        compiler_params=pltpu.CompilerParams(
            dimension_semantics=("parallel", "arbitrary")),
    )(*inputs)
    return out[:, :, :S]                                     # (B, 1, S)


# ---------------- pure-JAX reference (mirrors the PyTorch module) ----------------

def ref_attn(method, hidden, enc, params=None):
    if method == 'dot':
        energies = jnp.sum(hidden * enc, axis=2)
    elif method == 'general':
        energy = enc @ params['W'].T + params['b']
        energies = jnp.sum(hidden * energy, axis=2)
    else:  # concat
        hx = jnp.broadcast_to(hidden, enc.shape)
        energy = jnp.tanh(
            jnp.concatenate([hx, enc], axis=2) @ params['W'].T + params['b'])
        energies = jnp.sum(params['v'] * energy, axis=2)
    att = energies.T
    return jax.nn.softmax(att, axis=1)[:, None, :]


if __name__ == "__main__":
    key = jax.random.PRNGKey(0)
    B, H = 2, 32
    k1, k2, k3, k4, k5, k6, k7 = jax.random.split(key, 7)

    params_general = {
        'W': jax.random.normal(k3, (H, H), jnp.float32) * 0.1,
        'b': jax.random.normal(k4, (H,), jnp.float32) * 0.1,
    }
    params_concat = {
        'W': jax.random.normal(k5, (H, 2 * H), jnp.float32) * 0.1,
        'b': jax.random.normal(k6, (H,), jnp.float32) * 0.1,
        'v': jax.random.normal(k7, (H,), jnp.float32),
    }
    cases = [('dot', None), ('general', params_general), ('concat', params_concat)]

    # (S=8, auto tile)     -> single-tile fast epilogue path.
    # (S=300, tile=128)    -> multi-tile + padded path (forces seq grid > 1).
    for (S, seq_tile) in [(8, None), (300, 128)]:
        hidden = jax.random.normal(k1, (1, B, H), jnp.float32)
        enc = jax.random.normal(k2, (S, B, H), jnp.float32)
        for method, params in cases:
            out = jax.block_until_ready(
                run_attn(method, hidden, enc, params, seq_tile=seq_tile))
            ref = jax.block_until_ready(ref_attn(method, hidden, enc, params))
            assert out.shape == (B, 1, S), (method, S, out.shape)
            assert np.allclose(np.asarray(out), np.asarray(ref),
                               rtol=1e-4, atol=1e-4), (method, S)

    print("KERNEL_OK")
</pallas_src>

<mosaic_0001>
module attributes {stable_mosaic.version = 11 : i64} {
  func.func @dot_kernel(%arg0: i32, %arg1: i32, %arg2: memref<1x1x32xf32, #tpu.memory_space<vmem>>, %arg3: memref<1x32x128xf32, #tpu.memory_space<vmem>>, %arg4: memref<1x1x128xf32, #tpu.memory_space<vmem>>) attributes {dimension_semantics = [#tpu.dimension_semantics<parallel>, #tpu.dimension_semantics<arbitrary>], iteration_bounds = array<i64: 2, 1>, scalar_prefetch = 0 : i64, scratch_operands = 0 : i64, tpu.core_type = #tpu.core_type<tc>, window_params = [{transform_indices = @transform_0, window_bounds = array<i64: 1, 1, 32>}, {transform_indices = @transform_1, window_bounds = array<i64: 1, 32, 128>}, {transform_indices = @transform_2, window_bounds = array<i64: 1, 1, 128>}]} {
    %c0 = arith.constant 0 : index
    %c0_0 = arith.constant 0 : index
    %c0_1 = arith.constant 0 : index
    %0 = vector.load %arg2[%c0, %c0_0, %c0_1] : memref<1x1x32xf32, #tpu.memory_space<vmem>>, vector<1x1x32xf32>
    %1 = vector.shape_cast %0 : vector<1x1x32xf32> to vector<1x32xf32>
    %c0_2 = arith.constant 0 : index
    %c0_3 = arith.constant 0 : index
    %c0_4 = arith.constant 0 : index
    %2 = vector.load %arg3[%c0_2, %c0_3, %c0_4] : memref<1x32x128xf32, #tpu.memory_space<vmem>>, vector<1x32x128xf32>
    %3 = vector.shape_cast %2 : vector<1x32x128xf32> to vector<32x128xf32>
    %cst = arith.constant dense<0.000000e+00> : vector<1x128xf32>
    %4 = tpu.matmul %1, %3, %cst {dimension_numbers = #tpu.dot_dimension_numbers<[1], [0], [0], [1], [0, 0, 1, 1], [], []>} : vector<1x32xf32>, vector<32x128xf32>, vector<1x128xf32> -> vector<1x128xf32>
    %5 = tpu.iota {dimensions = array<i32: 1>} : vector<1x128xi32>
    %c8_i32 = arith.constant 8 : i32
    %6 = vector.broadcast %c8_i32 : i32 to vector<1x128xi32>
    %7 = arith.cmpi slt, %5, %6 : vector<1x128xi32>
    %cst_5 = arith.constant -1.000000e+30 : f32
    %8 = vector.broadcast %cst_5 : f32 to vector<1x128xf32>
    %9 = arith.select %7, %4, %8 : vector<1x128xi1>, vector<1x128xf32>
    %cst_6 = arith.constant dense<0xFF800000> : vector<1xf32>
    %10 = vector.multi_reduction <maximumf>, %9, %cst_6 [1] : vector<1x128xf32> to vector<1xf32>
    %11 = vector.shape_cast %10 : vector<1xf32> to vector<1x1xf32>
    %12 = vector.broadcast %11 : vector<1x1xf32> to vector<1x128xf32>
    %13 = arith.subf %9, %12 : vector<1x128xf32>
    %14 = math.exp %13 : vector<1x128xf32>
    %cst_7 = arith.constant dense<0.000000e+00> : vector<1xf32>
    %15 = vector.multi_reduction <add>, %14, %cst_7 [1] : vector<1x128xf32> to vector<1xf32>
    %16 = vector.shape_cast %15 : vector<1xf32> to vector<1x1xf32>
    %17 = vector.broadcast %16 : vector<1x1xf32> to vector<1x128xf32>
    %18 = arith.divf %14, %17 : vector<1x128xf32>
    %c0_8 = arith.constant 0 : index
    %c0_9 = arith.constant 0 : index
    %c0_10 = arith.constant 0 : index
    %19 = vector.load %arg4[%c0_8, %c0_9, %c0_10] : memref<1x1x128xf32, #tpu.memory_space<vmem>>, vector<1x1x128xf32>
    %20 = vector.shape_cast %19 : vector<1x1x128xf32> to vector<1x128xf32>
    %21 = vector.shape_cast %18 : vector<1x128xf32> to vector<1x1x128xf32>
    tpu.vector_store %arg4[%c0_8, %c0_9, %c0_10], %21 {strides = array<i32>} : memref<1x1x128xf32, #tpu.memory_space<vmem>>, vector<1x1x128xf32>,
    return
  }
  func.func @transform_0(%arg0: i32, %arg1: i32) -> (i32, i32, i32) {
    %c0_i32 = arith.constant 0 : i32
    %c0_i32_0 = arith.constant 0 : i32
    %c0_i32_1 = arith.constant 0 : i32
    return %arg0, %c0_i32, %c0_i32_0 : i32, i32, i32
  }
  func.func @transform_1(%arg0: i32, %arg1: i32) -> (i32, i32, i32) {
    %c0_i32 = arith.constant 0 : i32
    %c0_i32_0 = arith.constant 0 : i32
    return %arg0, %c0_i32, %arg1 : i32, i32, i32
  }
  func.func @transform_2(%arg0: i32, %arg1: i32) -> (i32, i32, i32) {
    %c0_i32 = arith.constant 0 : i32
    %c0_i32_0 = arith.constant 0 : i32
    %c0_i32_1 = arith.constant 0 : i32
    return %arg0, %c0_i32, %c0_i32_0 : i32, i32, i32
  }
}

</mosaic_0001>

<llo_original>
// kernel: tpu_custom_call.1
$region0: #{tpu_custom_call.1}
  #allocation0 [shape = 'u32[]', space=smem, size = 0x4, offset = 0x4, fixed_abs, tag = 'smem constant byte address 0x4 - core index']
  #allocation1 [shape = 'u32[144,128]{1,0:T(1,128)}', space=vmem, size = 0x12000, scoped, tag = 'internal scratch']
  %s0 = inlined_call_operand.hbm [shape: f32[2,1,32], index: 0, kind: input, shape index: {}]
  %s1 = inlined_call_operand.hbm [shape: f32[2,32,128], index: 1, kind: input, shape index: {}]
  %s2 = inlined_call_operand.hbm [shape: f32[2,1,128], index: 2, kind: output, shape index: {}]
  %s3 = sld [smem:[#allocation0]]
  $region49: #{tpu_custom_call.1} parent=0
    _
  %s5 = ssub.s32 1, %s3
  %s6 = scalar_select 0, %s5, %s3
  $region1: #{tpu_custom_call.1} parent=0
    #allocation2 [shape = 'u8[1024]{0}', space=vmem, size = 0x400, scoped, tag = 'input window, operand 0']
    #allocation3 [shape = 's32[2]{0}', space=sflag, size = 0x8, scoped, tag = 'scoped memory for tpu_custom_call.1']
    #allocation4 [shape = 's32[2]{0}', space=sflag, size = 0x8, scoped, tag = 'scoped memory for tpu_custom_call.1']
    #allocation5 [shape = 'u8[32768]{0}', space=vmem, size = 0x8000, scoped, tag = 'input window, operand 1']
    #allocation6 [shape = 's32[2]{0}', space=sflag, size = 0x8, scoped, tag = 'scoped memory for tpu_custom_call.1']
    #allocation7 [shape = 'u8[1024]{0}', space=vmem, size = 0x400, scoped, tag = 'output window, operand 0']
    %7 = vsyncpa [#allocation3], 0
    %s8 = scalar_lea.sflag [#allocation3], 1
    %9 = vsyncpa %s8, 0
    %10 = vsyncpa [#allocation6], 0
    %s11 = scalar_lea.sflag [#allocation6], 1
    %12 = vsyncpa %s11, 0
    %13 = vsyncpa [#allocation4], 0
    %s14 = scalar_lea.sflag [#allocation4], 1
    %15 = vsyncpa %s14, 0
    loop: start=0, step=1, limit=4
    $region2: #{tpu_custom_call.1} parent=1 // loop_pre_header
      _
    $region3: #{tpu_custom_call.1} parent=1 // loop_header
      %s17 = sphi 0, %s21
      %p18 = scmp.ge.s32.totalorder %s17, 4
      %s24 = sphi 0, %s36
      %s25 = sphi 0, %s32
      %s26 = sphi 0, %s24
      %s27 = sphi 0, %s25
      %s28 = sphi 0, %s26
      %s29 = sphi 0, %s27
      %s39 = sphi 0, %s41
      %s42 = sphi 0, %s39
      %s43 = sphi 0, %s42
      %s59 = sphi 0, %s43
      %s67 = sphi 0, %s69
      %s70 = sphi 0, %s67
      %s71 = sphi 0, %s70
      %s87 = sphi 0, %s71
      %s93 = sphi 0, %s95
      %s96 = sphi 0, %s93
      %s97 = sphi 0, %s96
      %s113 = sphi 0, %s97
    $region4: #{tpu_custom_call.1} parent=1 // loop_header_branch
      %20 = sbr.rel (%p18) target = $region8
    $region5: #{tpu_custom_call.1} parent=1 // loop_body
      %s22 = ssub.s32 %s17, 1
      %s23 = ssub.s32 %s17, 2
      %s30 = sadd.s32 1, %s25
      %p31 = scmp.ge.s32.totalorder %s30, 1
      %s32 = scalar_select %p31, 0, %s30
      %s33 = sadd.s32 1, %s24
      %s34 = scalar_select %p31, %s33, %s24
      %p35 = scmp.ge.s32.totalorder %s34, 2
      %s36 = scalar_select %p35, 0, %s34
      %s37 = ssub.s32 %s24, %s36
      %p38 = scmp.eq.s32.totalorder %s37, 0
      %s40 = sadd.s32 %s39, 1
      %s41 = scalar_select %p38, %s39, %s40
      %p44 = pneg %p38
      %p45 = scmp.eq.s32.totalorder %s17, 1
      %p46 = por %p44, %p45
      %p47 = scmp.ne.s32.totalorder %s39, %s42
      %p48 = scmp.eq.s32.totalorder %s17, 0
      %p49 = por %p47, %p48
      %p50 = scmp.ne.s32.totalorder %s39, %s42
      %p51 = scmp.eq.s32.totalorder %s22, 1
      %p52 = por %p50, %p51
      %p53 = scmp.ne.s32.totalorder %s42, %s43
      %p54 = scmp.eq.s32.totalorder %s22, 0
      %p55 = por %p53, %p54
      %p56 = scmp.ne.s32.totalorder %s42, %s43
      %p57 = scmp.eq.s32.totalorder %s23, 1
      %p58 = por %p56, %p57
      %p60 = scmp.ne.s32.totalorder %s43, %s59
      %p61 = scmp.eq.s32.totalorder %s23, 0
      %p62 = por %p60, %p61
      %s63 = ssub.s32 %s24, %s36
      %s64 = ssub.s32 %s25, %s32
      %s65 = sor.u32 %s63, %s64
      %p66 = scmp.eq.s32.totalorder %s65, 0
      %s68 = sadd.s32 %s67, 1
      %s69 = scalar_select %p66, %s67, %s68
      %p72 = pneg %p66
      %p73 = scmp.eq.s32.totalorder %s17, 1
      %p74 = por %p72, %p73
      %p75 = scmp.ne.s32.totalorder %s67, %s70
      %p76 = scmp.eq.s32.totalorder %s17, 0
      %p77 = por %p75, %p76
      %p78 = scmp.ne.s32.totalorder %s67, %s70
      %p79 = scmp.eq.s32.totalorder %s22, 1
      %p80 = por %p78, %p79
      %p81 = scmp.ne.s32.totalorder %s70, %s71
      %p82 = scmp.eq.s32.totalorder %s22, 0
      %p83 = por %p81, %p82
      %p84 = scmp.ne.s32.totalorder %s70, %s71
      %p85 = scmp.eq.s32.totalorder %s23, 1
      %p86 = por %p84, %p85
      %p88 = scmp.ne.s32.totalorder %s71, %s87
      %p89 = scmp.eq.s32.totalorder %s23, 0
      %p90 = por %p88, %p89
      %s91 = ssub.s32 %s24, %s36
      %p92 = scmp.eq.s32.totalorder %s91, 0
      %s94 = sadd.s32 %s93, 1
      %s95 = scalar_select %p92, %s93, %s94
      %p98 = pneg %p92
      %p99 = scmp.eq.s32.totalorder %s17, 1
      %p100 = por %p98, %p99
      %p101 = scmp.ne.s32.totalorder %s93, %s96
      %p102 = scmp.eq.s32.totalorder %s17, 0
      %p103 = por %p101, %p102
      %p104 = scmp.ne.s32.totalorder %s93, %s96
      %p105 = scmp.eq.s32.totalorder %s22, 1
      %p106 = por %p104, %p105
      %p107 = scmp.ne.s32.totalorder %s96, %s97
      %p108 = scmp.eq.s32.totalorder %s22, 0
      %p109 = por %p107, %p108
      %p110 = scmp.ne.s32.totalorder %s96, %s97
      %p111 = scmp.eq.s32.totalorder %s23, 1
      %p112 = por %p110, %p111
      %p114 = scmp.ne.s32.totalorder %s97, %s113
      %p115 = scmp.eq.s32.totalorder %s23, 0
      %p116 = por %p114, %p115
      %p117 = scmp.le.s32.totalorder 1, %s17
      %p118 = scmp.lt.s32.totalorder %s17, 3
      %p119 = pnand %p117, %p118
      %p120 = pneg %p119
      // Predicated region
      $region9: #{tpu_custom_call.1} parent=5 // pred_check
        _
      $region10: #{tpu_custom_call.1} parent=5 // pred_check_branch
        %122 = sbr.rel (%p119) target = $region12
      $region11: #{tpu_custom_call.1} parent=5 // pred_region
        %s123 = ssub.s32 %s17, 1
      $region12: #{tpu_custom_call.1} parent=5 // pred_fallthru
        _
      %p124 = scmp.lt.s32.totalorder %s17, 2
      // Predicated region
      $region13: #{tpu_custom_call.1} parent=5 // pred_check
        %p125 = pneg %p124
      $region14: #{tpu_custom_call.1} parent=5 // pred_check_branch
        %127 = sbr.rel (%p125) target = $region16
      $region15: #{tpu_custom_call.1} parent=5 // pred_region
        // Predicated region
        $region17: #{tpu_custom_call.1} parent=15 // pred_check
          %p128 = pneg %p49
        $region18: #{tpu_custom_call.1} parent=15 // pred_check_branch
          %130 = sbr.rel (%p128) target = $region20
        $region19: #{tpu_custom_call.1} parent=15 // pred_region
          %s131 = sand.u32 %s39, 1
          %s132 = scalar_lea.sflag [#allocation3], %s131
          %s133 = sand.u32 %s39, 1
          %s134 = scalar_lea.vmem [#allocation2], %s133
          %s136 = ssub.s32 16, 16
          %137 = vsyncadd %s132, %s136
          %s138 = smul.addr %s24, 16
          %s139 = scalar_lea.hbm %s0, %s138
          %s141 = sshll.u32 %s134, 4
          %s142 = int_to_ptr.vmem [resolvable:$true] %s141
          %144 = dma.hbm_to_vmem [thread:$0]  %s139, 16, %s142, %s132
        $region20: #{tpu_custom_call.1} parent=15 // pred_fallthru
          _
        // Predicated region
        $region21: #{tpu_custom_call.1} parent=15 // pred_check
          %p145 = pneg %p77
        $region22: #{tpu_custom_call.1} parent=15 // pred_check_branch
          %147 = sbr.rel (%p145) target = $region24
        $region23: #{tpu_custom_call.1} parent=15 // pred_region
          %s148 = sand.u32 %s67, 1
          %s149 = scalar_lea.sflag [#allocation6], %s148
          %s150 = sand.u32 %s67, 1
          %s151 = smul.addr %s150, 32
          %s152 = scalar_lea.vmem [#allocation5], %s151
          %s154 = ssub.s32 512, 512
          %155 = vsyncadd %s149, %s154
          %s156 = smul.addr %s24, 4
          %s157 = sadd.s32 %s25, %s156
          %s158 = smul.addr %s157, 128
          %s159 = scalar_lea.hbm %s1, %s158
          %s160 = sshll.u32 %s152, 4
          %s161 = int_to_ptr.vmem [resolvable:$true] %s160
          %166 = dma.hbm_to_vmem [thread:$0]  %s159, 512, %s161, %s149, 128, 128, 8
        $region24: #{tpu_custom_call.1} parent=15 // pred_fallthru
          _
      $region16: #{tpu_custom_call.1} parent=5 // pred_fallthru
        _
      %p167 = scmp.le.s32.totalorder 1, %s17
      %p168 = scmp.lt.s32.totalorder %s17, 3
      %p169 = pnand %p167, %p168
      %p170 = pneg %p169
      // Predicated region
      $region25: #{tpu_custom_call.1} parent=5 // pred_check
        _
      $region26: #{tpu_custom_call.1} parent=5 // pred_check_branch
        %172 = sbr.rel (%p169) target = $region28
      $region27: #{tpu_custom_call.1} parent=5 // pred_region
        %s173 = ssub.s32 %s17, 1
        %s174 = sand.u32 %s42, 1
        %s175 = scalar_lea.sflag [#allocation3], %s174
        %s176 = sand.u32 %s42, 1
        %s177 = scalar_lea.vmem [#allocation2], %s176
        // Predicated region
        $region29: #{tpu_custom_call.1} parent=27 // pred_check
          %p178 = pneg %p55
        $region30: #{tpu_custom_call.1} parent=27 // pred_check_branch
          %180 = sbr.rel (%p178) target = $region32
        $region31: #{tpu_custom_call.1} parent=27 // pred_region
          %181 = dma.done %s175, 16
        $region32: #{tpu_custom_call.1} parent=27 // pred_fallthru
          _
        %s182 = sand.u32 %s70, 1
        %s183 = scalar_lea.sflag [#allocation6], %s182
        %s184 = sand.u32 %s70, 1
        %s185 = smul.addr %s184, 32
        %s186 = scalar_lea.vmem [#allocation5], %s185
        // Predicated region
        $region33: #{tpu_custom_call.1} parent=27 // pred_check
          %p187 = pneg %p83
        $region34: #{tpu_custom_call.1} parent=27 // pred_check_branch
          %189 = sbr.rel (%p187) target = $region36
        $region35: #{tpu_custom_call.1} parent=27 // pred_region
          %190 = dma.done %s183, 512
        $region36: #{tpu_custom_call.1} parent=27 // pred_fallthru
          _
        %s191 = sand.u32 %s42, 1
        %s192 = scalar_lea.sflag [#allocation3], %s191
        %s193 = sand.u32 %s42, 1
        %s194 = scalar_lea.vmem [#allocation2], %s193
        %p195 = pneg %p55
        %p196 = pneg %p52
        %s197 = sand.u32 %s70, 1
        %s198 = scalar_lea.sflag [#allocation6], %s197
        %s199 = sand.u32 %s70, 1
        %s200 = smul.addr %s199, 32
        %s201 = scalar_lea.vmem [#allocation5], %s200
        %p202 = pneg %p83
        %p203 = pneg %p80
        %p204 = pneg %p109
        %p205 = pneg %p106
        %s206 = sand.u32 %s96, 1
        %s207 = scalar_lea.sflag [#allocation4], %s206
        %s208 = sand.u32 %s96, 1
        %s209 = scalar_lea.vmem [#allocation7], %s208
        %v210 = vld [vmem:[%s177] sm:$0x1]
        %v211 = vld [vmem:[%s186] sm:$0xff]
        %v212 = vld [vmem:[%s186 + $0x8] sm:$0xff]
        %v213 = vld [vmem:[%s186 + $0x10] sm:$0xff]
        %v214 = vld [vmem:[%s186 + $0x18] sm:$0xff]
        %vm215 = vcmask 261120
        %v217 = vsel %vm215, %v210, 0
        %219 = vmatprep.subr.mxu0 0.0
        %220 = vmatpush1.msra.mxu0 %v211
        %221 = vmatprep.subr.mxu0 0.0
        %222 = vmatpush1.msra.mxu0 %v212
        %223 = vmatprep.subr.mxu0 0.0
        %224 = vmatpush1.msra.mxu0 %v213
        %225 = vmatprep.subr.mxu0 0.0
        %226 = vmatpush1.msra.mxu0 %v214
        %227 = vmatprep.subr.mxu0 0.0
        %228 = vmatpush1.msra.mxu0 0.0
        %229 = vmatprep.subr.mxu0 0.0
        %230 = vmatpush1.msra.mxu0 0.0
        %231 = vmatprep.subr.mxu0 0.0
        %232 = vmatpush1.msra.mxu0 0.0
        %233 = vmatprep.subr.mxu0 0.0
        %234 = vmatpush1.msra.mxu0 0.0
        %235 = vmatprep.subr.mxu0 0.0
        %236 = vmatpush1.msra.mxu0 0.0
        %237 = vmatprep.subr.mxu0 0.0
        %238 = vmatpush1.msra.mxu0 0.0
        %239 = vmatprep.subr.mxu0 0.0
        %240 = vmatpush1.msra.mxu0 0.0
        %241 = vmatprep.subr.mxu0 0.0
        %242 = vmatpush1.msra.mxu0 0.0
        %243 = vmatprep.subr.mxu0 0.0
        %244 = vmatpush1.msra.mxu0 0.0
        %245 = vmatprep.subr.mxu0 0.0
        %246 = vmatpush1.msra.mxu0 0.0
        %247 = vmatprep.subr.mxu0 0.0
        %248 = vmatpush1.msra.mxu0 0.0
        %249 = vmatprep.subr.mxu0 0.0
        %250 = vmatpush1.msra.mxu0 0.0
        %251 = vmatprep.subr.mxu0 0.0
        %252 = vmatpush1.msra.mxu0 0.0
        %253 = vmatprep.subr.mxu0 0.0
        %254 = vmatpush1.msra.mxu0 0.0
        %255 = vmatprep.subr.mxu0 0.0
        %256 = vmatpush1.msra.mxu0 0.0
        %257 = vmatprep.subr.mxu0 0.0
        %258 = vmatpush1.msra.mxu0 0.0
        %259 = vmatprep.subr.mxu0 0.0
        %260 = vmatpush1.msra.mxu0 0.0
        %261 = vmatprep.subr.mxu0 0.0
        %262 = vmatpush1.msra.mxu0 0.0
        %263 = vmatprep.subr.mxu0 0.0
        %264 = vmatpush1.msra.mxu0 0.0
        %265 = vmatprep.subr.mxu0 0.0
        %266 = vmatpush1.msra.mxu0 0.0
        %267 = vmatprep.subr.mxu0 0.0
        %268 = vmatpush1.msra.mxu0 0.0
        %269 = vmatprep.subr.mxu0 0.0
        %270 = vmatpush1.msra.mxu0 0.0
        %271 = vmatprep.subr.mxu0 0.0
        %272 = vmatpush1.msra.mxu0 0.0
        %273 = vmatprep.subr.mxu0 0.0
        %274 = vmatpush1.msra.mxu0 0.0
        %275 = vmatprep.subr.mxu0 0.0
        %276 = vmatpush1.msra.mxu0 0.0
        %277 = vmatprep.subr.mxu0 0.0
        %278 = vmatpush1.msra.mxu0 0.0
        %279 = vmatprep.subr.mxu0 0.0
        %280 = vmatpush1.msra.mxu0 0.0
        %281 = vmatprep.subr.mxu0 0.0
        %282 = vmatpush1.msra.mxu0 0.0
        %283 = vmatprep.mubr.f32.mxu0 0.0
        %284 = vmatmul.mubr.f32.gmra.mrb[0].mxu0 %v217
        %v285 = vpop.f32.mrb[0].mxu0
        %v286 = vadd.f32 0.0, %v285
        %v287 = vpop.f32.mrb[0].mxu0
        %288 = vdwg.mxu0
        %v289 = vlaneseq
        %v290 = vand.u32 %v289, 127
        %vm291 = vcmp.lt.s32.totalorder %v290, 8
        %v292 = vsel %vm291, %v286, -1e+30
        %vm293 = vcmask 1040384
        %v294 = vsel %vm293, %v292, -inf
        %295 = vmax.xlane.f32.xlu0 %v294
        %v296 = vpop.xlane.xlu0 %295
        %v297 = vsub.f32 %v292, %v296
        %v298 = vmul.f32 %v297, 1.442695
        %v299 = vpow.pop %v298
        %v300 = vsel %vm293, %v299, 0.0
        %301 = vadd.xlane.f32.xlu0 %v300
        %v302 = vpop.xlane.xlu0 %301
        %v303 = vrcp.pop %v302
        %v304 = vmul.f32 %v299, %v303
        %305 = vst [vmem:[%s209] sm:$0x1] %v304
        %s306 = sand.u32 %s96, 1
        %s307 = scalar_lea.sflag [#allocation4], %s306
        %s308 = sand.u32 %s96, 1
        %s309 = scalar_lea.vmem [#allocation7], %s308
        // Predicated region
        $region37: #{tpu_custom_call.1} parent=27 // pred_check
          %p310 = pneg %p106
        $region38: #{tpu_custom_call.1} parent=27 // pred_check_branch
          %312 = sbr.rel (%p310) target = $region40
        $region39: #{tpu_custom_call.1} parent=27 // pred_region
          %s314 = ssub.s32 16, 16
          %315 = vsyncadd %s307, %s314
          %s316 = smul.addr %s26, 16
          %s317 = scalar_lea.hbm %s2, %s316
          %s319 = sshll.u32 %s309, 4
          %s320 = int_to_ptr.vmem [resolvable:$true] %s319
          %322 = dma.vmem_to_hbm [thread:$0]  %s320, 16, %s317, %s307
        $region40: #{tpu_custom_call.1} parent=27 // pred_fallthru
          _
      $region28: #{tpu_custom_call.1} parent=5 // pred_fallthru
        _
      %p323 = scmp.le.s32.totalorder 2, %s17
      // Predicated region
      $region41: #{tpu_custom_call.1} parent=5 // pred_check
        %p324 = pneg %p323
      $region42: #{tpu_custom_call.1} parent=5 // pred_check_branch
        %326 = sbr.rel (%p324) target = $region44
      $region43: #{tpu_custom_call.1} parent=5 // pred_region
        %s327 = ssub.s32 %s17, 2
        // Predicated region
        $region45: #{tpu_custom_call.1} parent=43 // pred_check
          %p328 = pneg %p112
        $region46: #{tpu_custom_call.1} parent=43 // pred_check_branch
          %330 = sbr.rel (%p328) target = $region48
        $region47: #{tpu_custom_call.1} parent=43 // pred_region
          %s331 = sand.u32 %s97, 1
          %s332 = scalar_lea.sflag [#allocation4], %s331
          %s333 = sand.u32 %s97, 1
          %s334 = scalar_lea.vmem [#allocation7], %s333
          %335 = dma.done %s332, 16
        $region48: #{tpu_custom_call.1} parent=43 // pred_fallthru
          _
      $region44: #{tpu_custom_call.1} parent=5 // pred_fallthru
        _
    $region6: #{tpu_custom_call.1} parent=1 // loop_footer
      %s21 = sadd.s32 1, %s17
    $region7: #{tpu_custom_call.1} parent=1 // loop_footer_branch
      %16 = sbr.rel target = $region3
    $region8: #{tpu_custom_call.1} parent=1 // loop_exit
      _
    %336 = vsyncpa [#allocation3], 1
    %s337 = scalar_lea.sflag [#allocation3], 1
    %338 = vsyncpa %s337, 1
    %339 = vsyncpa [#allocation6], 1
    %s340 = scalar_lea.sflag [#allocation6], 1
    %341 = vsyncpa %s340, 1
    %342 = vsyncpa [#allocation4], 1
    %s343 = scalar_lea.sflag [#allocation4], 1
    %344 = vsyncpa %s343, 1

</llo_original>
